<compile_context>
chip_gen: v7x
topology: tpu7x:2x2x1
jax: 0.10.0
libtpu: 0.0.40
codegen_flags: <defaults>
</compile_context>

<pallas_src>
import functools

import jax
import jax.numpy as jnp
from jax.experimental import pallas as pl
from jax.experimental.pallas import tpu as pltpu

NEG_SLOPE = 0.01  # torch.nn.LeakyReLU default negative_slope

# Packed-parameter slab layout (f32, shape (SLAB_ROWS, SLAB_COLS)):
#   rows [ 0:21) cols [0:6) : W1 (21, 6)    -- stored (in, out), natural dot order
#   rows [24:30) cols [0:4) : W2 (6, 4)
#   rows [32:36) cols [0:2) : W3 (4, 2)
#   row   40     cols [0:6) : b1
#   row   41     cols [0:4) : b2
#   row   42     cols [0:2) : b3
SLAB_ROWS, SLAB_COLS = 48, 128
W1_ROW, W2_ROW, W3_ROW = 0, 24, 32
B1_ROW, B2_ROW, B3_ROW = 40, 41, 42


def _round_up(x, m):
    return (x + m - 1) // m * m


def _leaky_relu(x):
    return jnp.where(x > 0, x, NEG_SLOPE * x)


def init_params(key, feature_space=21):
    """Deterministic init mimicking nn.Linear's uniform(-1/sqrt(fan_in), +).

    Weights stored as (in, out); biases as (1, out)."""
    dims = [(feature_space, 6), (6, 4), (4, 2)]
    params = {}
    for i, (fan_in, fan_out) in enumerate(dims, start=1):
        key, kw, kb = jax.random.split(key, 3)
        bound = 1.0 / (fan_in ** 0.5)
        params[f"w{i}"] = jax.random.uniform(
            kw, (fan_in, fan_out), jnp.float32, -bound, bound)
        params[f"b{i}"] = jax.random.uniform(
            kb, (1, fan_out), jnp.float32, -bound, bound)
    return params


def pack_params(params):
    """Pack w1,b1,w2,b2,w3,b3 into one (48, 128) f32 slab + return layer dims."""
    f, h1 = params["w1"].shape
    _, h2 = params["w2"].shape
    _, out = params["w3"].shape
    slab = jnp.zeros((SLAB_ROWS, SLAB_COLS), jnp.float32)
    slab = slab.at[W1_ROW:W1_ROW + f, 0:h1].set(params["w1"])
    slab = slab.at[W2_ROW:W2_ROW + h1, 0:h2].set(params["w2"])
    slab = slab.at[W3_ROW:W3_ROW + h2, 0:out].set(params["w3"])
    slab = slab.at[B1_ROW, 0:h1].set(params["b1"].reshape(-1))
    slab = slab.at[B2_ROW, 0:h2].set(params["b2"].reshape(-1))
    slab = slab.at[B3_ROW, 0:out].set(params["b3"].reshape(-1))
    return slab, (f, h1, h2, out)


def mlp_kernel(x_ref, w_ref, o_ref, *, dims):
    f, h1, h2, out = dims
    x = x_ref[...]                                  # (b_tile, f) -- natural layout

    # Static slices into the VMEM-resident packed slab (tiny, off critical path).
    w1 = w_ref[W1_ROW:W1_ROW + f, 0:h1]             # (f,  h1)
    w2 = w_ref[W2_ROW:W2_ROW + h1, 0:h2]            # (h1, h2)
    w3 = w_ref[W3_ROW:W3_ROW + h2, 0:out]           # (h2, out)
    b1 = w_ref[B1_ROW:B1_ROW + 1, 0:h1]             # (1, h1) -> broadcast over rows
    b2 = w_ref[B2_ROW:B2_ROW + 1, 0:h2]
    b3 = w_ref[B3_ROW:B3_ROW + 1, 0:out]

    h = jnp.dot(x, w1, preferred_element_type=jnp.float32) + b1
    h = _leaky_relu(h)
    h = jnp.dot(h, w2, preferred_element_type=jnp.float32) + b2
    h = _leaky_relu(h)
    y = jnp.dot(h, w3, preferred_element_type=jnp.float32) + b3
    o_ref[...] = y.astype(o_ref.dtype)              # (b_tile, out)


def base_mlp_forward(x, slab, dims, *, block_b=8192):
    """x: (B, feature_space) f32 -> (B, 2) f32.  slab/dims from pack_params."""
    f, h1, h2, out = dims
    B = x.shape[0]
    assert x.shape[1] == f, (x.shape, f)

    # --- batch-tile selection -------------------------------------------------
    # Large tiles amortize the ~0.35 us fixed per-grid-step overhead (at 512 the
    # payload was only ~47 KB/step -> <=10% of HBM roofline; at 8192 it is
    # ~0.75 MB/step).  Tiles are balanced against B so padding waste stays
    # under one 128-row group, and for large B we force >= 2 steps so the
    # "parallel" batch axis shards across both v7x TensorCores.
    if B <= 128:
        b_tile = B                       # single block == full batch dim (legal)
    else:
        n_steps = pl.cdiv(B, block_b)
        if n_steps == 1 and B > 256:
            n_steps = 2                  # keep both v7x TCs busy
        b_tile = _round_up(pl.cdiv(B, n_steps), 128)
    grid = (pl.cdiv(B, b_tile),)         # last block may be partial; Pallas masks it

    # --- VMEM budget ----------------------------------------------------------
    # Natural-layout (b_tile, 21) and (b_tile, 2) f32 blocks are lane-padded to
    # 128 lanes in VMEM: b_tile*512 B each, x2 for double buffering, for both
    # x and out.  Raise the scoped VMEM limit accordingly (v5e default is only
    # 16 MiB); cap at 48 MiB so the default tile stays inside v7x's 64 MiB
    # physical VMEM per core.
    block_vmem = b_tile * SLAB_COLS * 4
    vmem_limit = min(max(4 * block_vmem + (4 << 20), 32 << 20), 48 << 20)

    cost = pl.CostEstimate(
        flops=2 * B * (f * h1 + h1 * h2 + h2 * out),
        transcendentals=0,
        bytes_accessed=4 * (B * (f + out) + SLAB_ROWS * SLAB_COLS),
    )

    return pl.pallas_call(
        functools.partial(mlp_kernel, dims=dims),
        out_shape=jax.ShapeDtypeStruct((B, out), jnp.float32),
        grid=grid,
        in_specs=[
            # x tile: pipelined / double-buffered across the batch grid,
            # consumed in its natural (B, f) layout (no wrapper transpose pass).
            pl.BlockSpec((b_tile, f), lambda i: (i, 0)),
            # packed weights+biases: constant index_map -> DMA'd once, VMEM-resident.
            pl.BlockSpec((SLAB_ROWS, SLAB_COLS), lambda i: (0, 0)),
        ],
        out_specs=pl.BlockSpec((b_tile, out), lambda i: (i, 0)),
        compiler_params=pltpu.CompilerParams(
            dimension_semantics=("parallel",),   # shard batch across TCs (v7x)
            vmem_limit_bytes=vmem_limit,
        ),
        cost_estimate=cost,
    )(x, slab)


def reference_forward(x, params):
    h = x @ params["w1"] + params["b1"]
    h = jnp.where(h > 0, h, NEG_SLOPE * h)
    h = h @ params["w2"] + params["b2"]
    h = jnp.where(h > 0, h, NEG_SLOPE * h)
    return h @ params["w3"] + params["b3"]


if __name__ == "__main__":
    key = jax.random.PRNGKey(0)
    kx, kx2, kp = jax.random.split(key, 3)

    feature_space = 21
    params = init_params(kp, feature_space)
    slab, dims = pack_params(params)

    # Small demo batch (single grid step, block == full batch dim).
    x = jax.random.normal(kx, (8, feature_space), jnp.float32)
    out = jax.block_until_ready(base_mlp_forward(x, slab, dims))
    ref = reference_forward(x, params)
    assert out.shape == (8, 2), out.shape
    assert jnp.allclose(out, ref, atol=1e-4, rtol=1e-4), "mismatch vs reference (B=8)"

    # Multi-step parallel grid + uneven last block: B=300 -> two 256-row tiles,
    # only 44 valid rows in the last one (Pallas masks the OOB writeback).
    x2 = jax.random.normal(kx2, (300, feature_space), jnp.float32)
    out2 = jax.block_until_ready(base_mlp_forward(x2, slab, dims))
    ref2 = reference_forward(x2, params)
    assert out2.shape == (300, 2), out2.shape
    assert jnp.allclose(out2, ref2, atol=1e-4, rtol=1e-4), "mismatch vs reference (B=300)"

    print("KERNEL_OK")
</pallas_src>

<mosaic_0001>
module attributes {stable_mosaic.version = 11 : i64} {
  func.func @mlp_kernel(%arg0: i32, %arg1: memref<8x21xf32, #tpu.memory_space<vmem>>, %arg2: memref<48x128xf32, #tpu.memory_space<vmem>>, %arg3: memref<8x2xf32, #tpu.memory_space<vmem>>) attributes {dimension_semantics = [#tpu.dimension_semantics<parallel>], iteration_bounds = array<i64: 1>, scalar_prefetch = 0 : i64, scratch_operands = 0 : i64, tpu.core_type = #tpu.core_type<tc>, window_params = [{transform_indices = @transform_0, window_bounds = array<i64: 8, 21>}, {pipeline_mode = #tpu.pipeline_mode<synchronous>, transform_indices = @transform_1, window_bounds = array<i64: 48, 128>}, {transform_indices = @transform_2, window_bounds = array<i64: 8, 2>}]} {
    %c0 = arith.constant 0 : index
    %c0_0 = arith.constant 0 : index
    %0 = vector.load %arg1[%c0, %c0_0] : memref<8x21xf32, #tpu.memory_space<vmem>>, vector<8x21xf32>
    %c0_1 = arith.constant 0 : index
    %c0_2 = arith.constant 0 : index
    %1 = vector.load %arg2[%c0_1, %c0_2] : memref<48x128xf32, #tpu.memory_space<vmem>>, vector<21x6xf32>
    %c24 = arith.constant 24 : index
    %c0_3 = arith.constant 0 : index
    %2 = vector.load %arg2[%c24, %c0_3] : memref<48x128xf32, #tpu.memory_space<vmem>>, vector<6x4xf32>
    %c32 = arith.constant 32 : index
    %c0_4 = arith.constant 0 : index
    %3 = vector.load %arg2[%c32, %c0_4] : memref<48x128xf32, #tpu.memory_space<vmem>>, vector<4x2xf32>
    %c40 = arith.constant 40 : index
    %c0_5 = arith.constant 0 : index
    %4 = vector.load %arg2[%c40, %c0_5] : memref<48x128xf32, #tpu.memory_space<vmem>>, vector<1x6xf32>
    %c41 = arith.constant 41 : index
    %c0_6 = arith.constant 0 : index
    %5 = vector.load %arg2[%c41, %c0_6] : memref<48x128xf32, #tpu.memory_space<vmem>>, vector<1x4xf32>
    %c42 = arith.constant 42 : index
    %c0_7 = arith.constant 0 : index
    %6 = vector.load %arg2[%c42, %c0_7] : memref<48x128xf32, #tpu.memory_space<vmem>>, vector<1x2xf32>
    %cst = arith.constant dense<0.000000e+00> : vector<8x6xf32>
    %7 = tpu.matmul %0, %1, %cst {dimension_numbers = #tpu.dot_dimension_numbers<[1], [0], [0], [1], [0, 0, 1, 1], [], []>} : vector<8x21xf32>, vector<21x6xf32>, vector<8x6xf32> -> vector<8x6xf32>
    %8 = vector.broadcast %4 : vector<1x6xf32> to vector<8x6xf32>
    %9 = arith.addf %7, %8 : vector<8x6xf32>
    %cst_8 = arith.constant 0.000000e+00 : f32
    %10 = vector.broadcast %cst_8 : f32 to vector<8x6xf32>
    %11 = arith.cmpf ogt, %9, %10 : vector<8x6xf32>
    %cst_9 = arith.constant 0.00999999977 : f32
    %12 = vector.broadcast %cst_9 : f32 to vector<8x6xf32>
    %13 = arith.mulf %12, %9 : vector<8x6xf32>
    %14 = arith.select %11, %9, %13 : vector<8x6xi1>, vector<8x6xf32>
    %cst_10 = arith.constant dense<0.000000e+00> : vector<8x4xf32>
    %15 = tpu.matmul %14, %2, %cst_10 {dimension_numbers = #tpu.dot_dimension_numbers<[1], [0], [0], [1], [0, 0, 1, 1], [], []>} : vector<8x6xf32>, vector<6x4xf32>, vector<8x4xf32> -> vector<8x4xf32>
    %16 = vector.broadcast %5 : vector<1x4xf32> to vector<8x4xf32>
    %17 = arith.addf %15, %16 : vector<8x4xf32>
    %cst_11 = arith.constant 0.000000e+00 : f32
    %18 = vector.broadcast %cst_11 : f32 to vector<8x4xf32>
    %19 = arith.cmpf ogt, %17, %18 : vector<8x4xf32>
    %cst_12 = arith.constant 0.00999999977 : f32
    %20 = vector.broadcast %cst_12 : f32 to vector<8x4xf32>
    %21 = arith.mulf %20, %17 : vector<8x4xf32>
    %22 = arith.select %19, %17, %21 : vector<8x4xi1>, vector<8x4xf32>
    %cst_13 = arith.constant dense<0.000000e+00> : vector<8x2xf32>
    %23 = tpu.matmul %22, %3, %cst_13 {dimension_numbers = #tpu.dot_dimension_numbers<[1], [0], [0], [1], [0, 0, 1, 1], [], []>} : vector<8x4xf32>, vector<4x2xf32>, vector<8x2xf32> -> vector<8x2xf32>
    %24 = vector.broadcast %6 : vector<1x2xf32> to vector<8x2xf32>
    %25 = arith.addf %23, %24 : vector<8x2xf32>
    %c0_14 = arith.constant 0 : index
    %c0_15 = arith.constant 0 : index
    %26 = vector.load %arg3[%c0_14, %c0_15] : memref<8x2xf32, #tpu.memory_space<vmem>>, vector<8x2xf32>
    tpu.vector_store %arg3[%c0_14, %c0_15], %25 {strides = array<i32>} : memref<8x2xf32, #tpu.memory_space<vmem>>, vector<8x2xf32>,
    return
  }
  func.func @transform_0(%arg0: i32) -> (i32, i32) {
    %c0_i32 = arith.constant 0 : i32
    %c0_i32_0 = arith.constant 0 : i32
    return %arg0, %c0_i32 : i32, i32
  }
  func.func @transform_1(%arg0: i32) -> (i32, i32) {
    %c0_i32 = arith.constant 0 : i32
    %c0_i32_0 = arith.constant 0 : i32
    %c0_i32_1 = arith.constant 0 : i32
    return %c0_i32, %c0_i32_0 : i32, i32
  }
  func.func @transform_2(%arg0: i32) -> (i32, i32) {
    %c0_i32 = arith.constant 0 : i32
    %c0_i32_0 = arith.constant 0 : i32
    return %arg0, %c0_i32 : i32, i32
  }
}

</mosaic_0001>

<llo_original>
// kernel: tpu_custom_call.1
$region0: #{tpu_custom_call.1}
  #allocation0 [shape = 'u32[]', space=smem, size = 0x4, offset = 0x4, fixed_abs, tag = 'smem constant byte address 0x4 - core index']
  #allocation1 [shape = 'u32[144,128]{1,0:T(1,128)}', space=vmem, size = 0x12000, scoped, tag = 'internal scratch']
  %s0 = inlined_call_operand.hbm [shape: f32[8,21], index: 0, kind: input, shape index: {}]
  %s1 = inlined_call_operand.hbm [shape: f32[48,128], index: 1, kind: input, shape index: {}]
  %s2 = inlined_call_operand.vmem [shape: f32[8,2], index: 2, kind: output, shape index: {}]
  %s3 = sld [smem:[#allocation0]]
  $region26: #{tpu_custom_call.1} parent=0
    _
  %s5 = ssub.s32 1, %s3
  %s6 = scalar_select 0, %s5, %s3
  $region1: #{tpu_custom_call.1} parent=0
    #allocation2 [shape = 'u8[4096]{0}', space=vmem, size = 0x1000, scoped, tag = 'input window, operand 0, single buffered']
    #allocation3 [shape = 's32[1]{0}', space=sflag, size = 0x4, scoped, tag = 'scoped memory for tpu_custom_call.1']
    #allocation4 [shape = 'u8[24576]{0}', space=vmem, size = 0x6000, scoped, tag = 'input window, operand 1, single buffered']
    #allocation5 [shape = 's32[1]{0}', space=sflag, size = 0x4, scoped, tag = 'scoped memory for tpu_custom_call.1']
    %7 = vsyncpa [#allocation3], 0
    %8 = vsyncpa [#allocation5], 0
    // Predicated region
    $region2: #{tpu_custom_call.1} parent=1 // pred_check
      _
    $region3: #{tpu_custom_call.1} parent=1 // pred_check_branch
      %10 = sbr.rel (0) target = $region5
    $region4: #{tpu_custom_call.1} parent=1 // pred_region
      %s12 = ssub.s32 128, 128
      %13 = vsyncadd [#allocation3], %s12
      %s15 = sshll.u32 [#allocation2], 4
      %s16 = int_to_ptr.vmem [resolvable:$true] %s15
      %18 = dma.hbm_to_vmem [thread:$0]  %s0, 128, %s16, [#allocation3]
    $region5: #{tpu_custom_call.1} parent=1 // pred_fallthru
      _
    // Predicated region
    $region6: #{tpu_custom_call.1} parent=1 // pred_check
      _
    $region7: #{tpu_custom_call.1} parent=1 // pred_check_branch
      %20 = sbr.rel (0) target = $region9
    $region8: #{tpu_custom_call.1} parent=1 // pred_region
      %s22 = ssub.s32 768, 768
      %23 = vsyncadd [#allocation5], %s22
      %s24 = sshll.u32 [#allocation4], 4
      %s25 = int_to_ptr.vmem [resolvable:$true] %s24
      %30 = dma.hbm_to_vmem [thread:$0]  %s1, 768, %s25, [#allocation5], 128, 128, 8
    $region9: #{tpu_custom_call.1} parent=1 // pred_fallthru
      _
    // Predicated region
    $region10: #{tpu_custom_call.1} parent=1 // pred_check
      _
    $region11: #{tpu_custom_call.1} parent=1 // pred_check_branch
      %32 = sbr.rel (0) target = $region13
    $region12: #{tpu_custom_call.1} parent=1 // pred_region
      %33 = dma.done [#allocation3], 128
    $region13: #{tpu_custom_call.1} parent=1 // pred_fallthru
      _
    // Predicated region
    $region14: #{tpu_custom_call.1} parent=1 // pred_check
      _
    $region15: #{tpu_custom_call.1} parent=1 // pred_check_branch
      %35 = sbr.rel (0) target = $region17
    $region16: #{tpu_custom_call.1} parent=1 // pred_region
      %36 = dma.done [#allocation5], 768
    $region17: #{tpu_custom_call.1} parent=1 // pred_fallthru
      _
    %v37 = vld [vmem:[#allocation2] sm:$0xff]
    %v38 = vld [vmem:[#allocation4] sm:$0xff]
    %v39 = vld [vmem:[#allocation4 + $0x8] sm:$0xff]
    %v40 = vld [vmem:[#allocation4 + $0x10] sm:$0x1f]
    %v41 = vld [vmem:[#allocation4 + $0x18] sm:$0x3f]
    %v42 = vld [vmem:[#allocation4 + $0x20] sm:$0xf]
    %v43 = vld [vmem:[#allocation4 + $0x28] sm:$0x1]
    %v44 = vld [vmem:[#allocation4 + $0x29] sm:$0x1]
    %v45 = vld [vmem:[#allocation4 + $0x2a] sm:$0x1]
    %v46 = vlaneseq
    %v47 = vshrl.u32 %v46, 7
    %v48 = vsub.s32 0, %v47
    %v49 = vrot.slane %v43, %v48
    %vm50 = vcmask 171008
    %v52 = vsel %vm50, %v37, 0
    %vm54 = vcmask 1044480
    %v56 = vsel %vm54, %v40, 0
    %58 = vmatprep.subr.mxu0 0.0
    %59 = vmatpush1.msra.mxu0 %v38
    %60 = vmatprep.subr.mxu0 0.0
    %61 = vmatpush1.msra.mxu0 %v39
    %62 = vmatprep.subr.mxu0 0.0
    %63 = vmatpush1.msra.mxu0 %v56
    %64 = vmatprep.subr.mxu0 0.0
    %65 = vmatpush1.msra.mxu0 0.0
    %66 = vmatprep.subr.mxu0 0.0
    %67 = vmatpush1.msra.mxu0 0.0
    %68 = vmatprep.subr.mxu0 0.0
    %69 = vmatpush1.msra.mxu0 0.0
    %70 = vmatprep.subr.mxu0 0.0
    %71 = vmatpush1.msra.mxu0 0.0
    %72 = vmatprep.subr.mxu0 0.0
    %73 = vmatpush1.msra.mxu0 0.0
    %74 = vmatprep.subr.mxu0 0.0
    %75 = vmatpush1.msra.mxu0 0.0
    %76 = vmatprep.subr.mxu0 0.0
    %77 = vmatpush1.msra.mxu0 0.0
    %78 = vmatprep.subr.mxu0 0.0
    %79 = vmatpush1.msra.mxu0 0.0
    %80 = vmatprep.subr.mxu0 0.0
    %81 = vmatpush1.msra.mxu0 0.0
    %82 = vmatprep.subr.mxu0 0.0
    %83 = vmatpush1.msra.mxu0 0.0
    %84 = vmatprep.subr.mxu0 0.0
    %85 = vmatpush1.msra.mxu0 0.0
    %86 = vmatprep.subr.mxu0 0.0
    %87 = vmatpush1.msra.mxu0 0.0
    %88 = vmatprep.subr.mxu0 0.0
    %89 = vmatpush1.msra.mxu0 0.0
    %90 = vmatprep.subr.mxu0 0.0
    %91 = vmatpush1.msra.mxu0 0.0
    %92 = vmatprep.subr.mxu0 0.0
    %93 = vmatpush1.msra.mxu0 0.0
    %94 = vmatprep.subr.mxu0 0.0
    %95 = vmatpush1.msra.mxu0 0.0
    %96 = vmatprep.subr.mxu0 0.0
    %97 = vmatpush1.msra.mxu0 0.0
    %98 = vmatprep.subr.mxu0 0.0
    %99 = vmatpush1.msra.mxu0 0.0
    %100 = vmatprep.subr.mxu0 0.0
    %101 = vmatpush1.msra.mxu0 0.0
    %102 = vmatprep.subr.mxu0 0.0
    %103 = vmatpush1.msra.mxu0 0.0
    %104 = vmatprep.subr.mxu0 0.0
    %105 = vmatpush1.msra.mxu0 0.0
    %106 = vmatprep.subr.mxu0 0.0
    %107 = vmatpush1.msra.mxu0 0.0
    %108 = vmatprep.subr.mxu0 0.0
    %109 = vmatpush1.msra.mxu0 0.0
    %110 = vmatprep.subr.mxu0 0.0
    %111 = vmatpush1.msra.mxu0 0.0
    %112 = vmatprep.subr.mxu0 0.0
    %113 = vmatpush1.msra.mxu0 0.0
    %114 = vmatprep.subr.mxu0 0.0
    %115 = vmatpush1.msra.mxu0 0.0
    %116 = vmatprep.subr.mxu0 0.0
    %117 = vmatpush1.msra.mxu0 0.0
    %118 = vmatprep.subr.mxu0 0.0
    %119 = vmatpush1.msra.mxu0 0.0
    %120 = vmatprep.subr.mxu0 0.0
    %121 = vmatpush1.msra.mxu0 0.0
    %122 = vmatprep.mubr.f32.mxu0 0.0
    %123 = vmatmul.mubr.f32.gmra.mrb[0].mxu0 %v52
    %v124 = vpop.f32.mrb[0].mxu0
    %v125 = vadd.f32 %v49, %v124
    %v126 = vpop.f32.mrb[0].mxu0
    %127 = vdwg.mxu0
    %vm128 = vcmp.gt.f32.partialorder %v125, 0.0
    %v129 = vmul.f32 %v125, 0.01
    %v130 = vsel %vm128, %v125, %v129
    %v131 = vlaneseq
    %v132 = vshrl.u32 %v131, 7
    %v133 = vsub.s32 0, %v132
    %v134 = vrot.slane %v44, %v133
    %vm135 = vcmask 48128
    %v137 = vsel %vm135, %v130, 0
    %vm139 = vcmask 1045504
    %v141 = vsel %vm139, %v41, 0
    %143 = vmatprep.subr.mxu0 0.0
    %144 = vmatpush1.msra.mxu0 %v141
    %145 = vmatprep.subr.mxu0 0.0
    %146 = vmatpush1.msra.mxu0 0.0
    %147 = vmatprep.subr.mxu0 0.0
    %148 = vmatpush1.msra.mxu0 0.0
    %149 = vmatprep.subr.mxu0 0.0
    %150 = vmatpush1.msra.mxu0 0.0
    %151 = vmatprep.subr.mxu0 0.0
    %152 = vmatpush1.msra.mxu0 0.0
    %153 = vmatprep.subr.mxu0 0.0
    %154 = vmatpush1.msra.mxu0 0.0
    %155 = vmatprep.subr.mxu0 0.0
    %156 = vmatpush1.msra.mxu0 0.0
    %157 = vmatprep.subr.mxu0 0.0
    %158 = vmatpush1.msra.mxu0 0.0
    %159 = vmatprep.subr.mxu0 0.0
    %160 = vmatpush1.msra.mxu0 0.0
    %161 = vmatprep.subr.mxu0 0.0
    %162 = vmatpush1.msra.mxu0 0.0
    %163 = vmatprep.subr.mxu0 0.0
    %164 = vmatpush1.msra.mxu0 0.0
    %165 = vmatprep.subr.mxu0 0.0
    %166 = vmatpush1.msra.mxu0 0.0
    %167 = vmatprep.subr.mxu0 0.0
    %168 = vmatpush1.msra.mxu0 0.0
    %169 = vmatprep.subr.mxu0 0.0
    %170 = vmatpush1.msra.mxu0 0.0
    %171 = vmatprep.subr.mxu0 0.0
    %172 = vmatpush1.msra.mxu0 0.0
    %173 = vmatprep.subr.mxu0 0.0
    %174 = vmatpush1.msra.mxu0 0.0
    %175 = vmatprep.subr.mxu0 0.0
    %176 = vmatpush1.msra.mxu0 0.0
    %177 = vmatprep.subr.mxu0 0.0
    %178 = vmatpush1.msra.mxu0 0.0
    %179 = vmatprep.subr.mxu0 0.0
    %180 = vmatpush1.msra.mxu0 0.0
    %181 = vmatprep.subr.mxu0 0.0
    %182 = vmatpush1.msra.mxu0 0.0
    %183 = vmatprep.subr.mxu0 0.0
    %184 = vmatpush1.msra.mxu0 0.0
    %185 = vmatprep.subr.mxu0 0.0
    %186 = vmatpush1.msra.mxu0 0.0
    %187 = vmatprep.subr.mxu0 0.0
    %188 = vmatpush1.msra.mxu0 0.0
    %189 = vmatprep.subr.mxu0 0.0
    %190 = vmatpush1.msra.mxu0 0.0
    %191 = vmatprep.subr.mxu0 0.0
    %192 = vmatpush1.msra.mxu0 0.0
    %193 = vmatprep.subr.mxu0 0.0
    %194 = vmatpush1.msra.mxu0 0.0
    %195 = vmatprep.subr.mxu0 0.0
    %196 = vmatpush1.msra.mxu0 0.0
    %197 = vmatprep.subr.mxu0 0.0
    %198 = vmatpush1.msra.mxu0 0.0
    %199 = vmatprep.subr.mxu0 0.0
    %200 = vmatpush1.msra.mxu0 0.0
    %201 = vmatprep.subr.mxu0 0.0
    %202 = vmatpush1.msra.mxu0 0.0
    %203 = vmatprep.subr.mxu0 0.0
    %204 = vmatpush1.msra.mxu0 0.0
    %205 = vmatprep.subr.mxu0 0.0
    %206 = vmatpush1.msra.mxu0 0.0
    %207 = vmatprep.mubr.f32.mxu0 0.0
    %208 = vmatmul.mubr.f32.gmra.mrb[0].mxu0 %v137
    %v209 = vpop.f32.mrb[0].mxu0
    %v210 = vadd.f32 %v134, %v209
    %v211 = vpop.f32.mrb[0].mxu0
    %212 = vdwg.mxu0
    %vm213 = vcmp.gt.f32.partialorder %v210, 0.0
    %v214 = vmul.f32 %v210, 0.01
    %v215 = vsel %vm213, %v210, %v214
    %v216 = vlaneseq
    %v217 = vshrl.u32 %v216, 7
    %v218 = vsub.s32 0, %v217
    %v219 = vrot.slane %v45, %v218
    %vm220 = vcmask 31744
    %v222 = vsel %vm220, %v215, 0
    %vm224 = vcmask 1043456
    %v226 = vsel %vm224, %v42, 0
    %228 = vmatprep.subr.mxu0 0.0
    %229 = vmatpush1.msra.mxu0 %v226
    %230 = vmatprep.subr.mxu0 0.0
    %231 = vmatpush1.msra.mxu0 0.0
    %232 = vmatprep.subr.mxu0 0.0
    %233 = vmatpush1.msra.mxu0 0.0
    %234 = vmatprep.subr.mxu0 0.0
    %235 = vmatpush1.msra.mxu0 0.0
    %236 = vmatprep.subr.mxu0 0.0
    %237 = vmatpush1.msra.mxu0 0.0
    %238 = vmatprep.subr.mxu0 0.0
    %239 = vmatpush1.msra.mxu0 0.0
    %240 = vmatprep.subr.mxu0 0.0
    %241 = vmatpush1.msra.mxu0 0.0
    %242 = vmatprep.subr.mxu0 0.0
    %243 = vmatpush1.msra.mxu0 0.0
    %244 = vmatprep.subr.mxu0 0.0
    %245 = vmatpush1.msra.mxu0 0.0
    %246 = vmatprep.subr.mxu0 0.0
    %247 = vmatpush1.msra.mxu0 0.0
    %248 = vmatprep.subr.mxu0 0.0
    %249 = vmatpush1.msra.mxu0 0.0
    %250 = vmatprep.subr.mxu0 0.0
    %251 = vmatpush1.msra.mxu0 0.0
    %252 = vmatprep.subr.mxu0 0.0
    %253 = vmatpush1.msra.mxu0 0.0
    %254 = vmatprep.subr.mxu0 0.0
    %255 = vmatpush1.msra.mxu0 0.0
    %256 = vmatprep.subr.mxu0 0.0
    %257 = vmatpush1.msra.mxu0 0.0
    %258 = vmatprep.subr.mxu0 0.0
    %259 = vmatpush1.msra.mxu0 0.0
    %260 = vmatprep.subr.mxu0 0.0
    %261 = vmatpush1.msra.mxu0 0.0
    %262 = vmatprep.subr.mxu0 0.0
    %263 = vmatpush1.msra.mxu0 0.0
    %264 = vmatprep.subr.mxu0 0.0
    %265 = vmatpush1.msra.mxu0 0.0
    %266 = vmatprep.subr.mxu0 0.0
    %267 = vmatpush1.msra.mxu0 0.0
    %268 = vmatprep.subr.mxu0 0.0
    %269 = vmatpush1.msra.mxu0 0.0
    %270 = vmatprep.subr.mxu0 0.0
    %271 = vmatpush1.msra.mxu0 0.0
    %272 = vmatprep.subr.mxu0 0.0
    %273 = vmatpush1.msra.mxu0 0.0
    %274 = vmatprep.subr.mxu0 0.0
    %275 = vmatpush1.msra.mxu0 0.0
    %276 = vmatprep.subr.mxu0 0.0
    %277 = vmatpush1.msra.mxu0 0.0
    %278 = vmatprep.subr.mxu0 0.0
    %279 = vmatpush1.msra.mxu0 0.0
    %280 = vmatprep.subr.mxu0 0.0
    %281 = vmatpush1.msra.mxu0 0.0
    %282 = vmatprep.subr.mxu0 0.0
    %283 = vmatpush1.msra.mxu0 0.0
    %284 = vmatprep.subr.mxu0 0.0
    %285 = vmatpush1.msra.mxu0 0.0
    %286 = vmatprep.subr.mxu0 0.0
    %287 = vmatpush1.msra.mxu0 0.0
    %288 = vmatprep.subr.mxu0 0.0
    %289 = vmatpush1.msra.mxu0 0.0
    %290 = vmatprep.subr.mxu0 0.0
    %291 = vmatpush1.msra.mxu0 0.0
    %292 = vmatprep.mubr.f32.mxu0 0.0
    %293 = vmatmul.mubr.f32.gmra.mrb[0].mxu0 %v222
    %v294 = vpop.f32.mrb[0].mxu0
    %v295 = vadd.f32 %v219, %v294
    %v296 = vpop.f32.mrb[0].mxu0
    %297 = vdwg.mxu0
    %vm298 = vcmask 15360
    %299 = vst.msk [vmem:[%s2] sm:$0xff] %vm298, %v295
    // Predicated region
    $region18: #{tpu_custom_call.1} parent=1 // pred_check
      _
    $region19: #{tpu_custom_call.1} parent=1 // pred_check_branch
      %301 = sbr.rel (0) target = $region21
    $region20: #{tpu_custom_call.1} parent=1 // pred_region
      _
    $region21: #{tpu_custom_call.1} parent=1 // pred_fallthru
      _
    // Predicated region
    $region22: #{tpu_custom_call.1} parent=1 // pred_check
      _
    $region23: #{tpu_custom_call.1} parent=1 // pred_check_branch
      %303 = sbr.rel (0) target = $region25
    $region24: #{tpu_custom_call.1} parent=1 // pred_region
      _
    $region25: #{tpu_custom_call.1} parent=1 // pred_fallthru
      _
    %304 = vsyncpa [#allocation3], 1
    %305 = vsyncpa [#allocation5], 1

</llo_original>
